<compile_context>
chip_gen: v6e
topology: v6e:2x2x1
jax: 0.10.0
libtpu: 0.0.40
codegen_flags: <defaults>
</compile_context>

<pallas_src>
import math
from functools import partial

import jax
import jax.numpy as jnp
from jax.experimental import pallas as pl
from jax.experimental.pallas import tpu as pltpu


def _round_up(n, m):
    return ((n + m - 1) // m) * m


def _mlp_kernel(x_ref, w1_ref, b1_ref, w2_ref, b2_ref, o_ref):
    # h = relu(x @ w1 + b1); MXU matmul with f32 accumulation, f32 VPU math.
    h = jnp.dot(x_ref[...], w1_ref[...], preferred_element_type=jnp.float32)
    h = jnp.maximum(h + b1_ref[...], 0.0)          # (TB, H) + (1, H) broadcast
    # out = h @ w2 + b2.  h is cast to the weight dtype before the second dot
    # (no-op for f32; bf16 operands on v6e/v7x) -- the only precision-losing
    # step; accumulation stays f32.
    out = jnp.dot(h.astype(w2_ref.dtype), w2_ref[...],
                  preferred_element_type=jnp.float32)
    o_ref[...] = (out + b2_ref[...]).astype(o_ref.dtype)


@partial(jax.jit, static_argnames=("block_b",))
def simple_linear_forward(x, w1, b1, w2, b2, *, block_b=512):
    """Fused MLP forward.

    x : (B, D)    -- any float dtype; output keeps this dtype.
    w1: (D, H)    -- already (in, out) layout, in the desired MXU dtype.
    b1: (1, H)    -- f32.
    w2: (H, C)    -- (in, out) layout, MXU dtype.
    b2: (1, C)    -- f32.
    """
    B, D = x.shape
    H = w1.shape[1]
    C = w2.shape[1]
    out_dtype = x.dtype

    # Feed the MXU the weight dtype (bf16 path on v6e/v7x, f32 otherwise).
    x = x.astype(w1.dtype)

    # Batch tile: grow with B (amortize per-step overhead) but keep at least
    # two grid steps when B > 8 so both v7x TensorCores get work.
    TB = min(block_b, max(8, _round_up(pl.cdiv(B, 2), 8)))
    B_pad = _round_up(B, TB)
    if B_pad != B:
        x = jnp.pad(x, ((0, B_pad - B), (0, 0)))

    vmem = pltpu.MemorySpace.VMEM
    out_p = pl.pallas_call(
        _mlp_kernel,
        out_shape=jax.ShapeDtypeStruct((B_pad, C), out_dtype),
        grid=(B_pad // TB,),
        in_specs=[
            # x tile walks the batch grid axis; D is the full (unpadded) dim.
            pl.BlockSpec((TB, D), lambda i: (i, 0), memory_space=vmem),
            # Weights / biases: constant index_map -> VMEM-resident.
            pl.BlockSpec((D, H), lambda i: (0, 0), memory_space=vmem),
            pl.BlockSpec((1, H), lambda i: (0, 0), memory_space=vmem),
            pl.BlockSpec((H, C), lambda i: (0, 0), memory_space=vmem),
            pl.BlockSpec((1, C), lambda i: (0, 0), memory_space=vmem),
        ],
        # Real class width C (block dim == full array dim); masked store, but
        # ~12x less HBM write traffic than padding C to 128.
        out_specs=pl.BlockSpec((TB, C), lambda i: (i, 0), memory_space=vmem),
        compiler_params=pltpu.CompilerParams(
            dimension_semantics=("parallel",),
            vmem_limit_bytes=64 * 1024 * 1024),
    )(x, w1, b1, w2, b2)

    return out_p[:B] if B_pad != B else out_p


def init_params(key, input_dim, num_classes, dtype=jnp.float32):
    """Parameter init matching the PyTorch module's scheme.

    fc.weight  : kaiming_uniform_(nonlinearity='relu') -> U(-b, b), b = sqrt(2)*sqrt(3/fan_in)
    fc.bias    : default nn.Linear init                -> U(-1/sqrt(fan_in), 1/sqrt(fan_in))
    fc2.weight : default nn.Linear init                -> U(-1/sqrt(fan_in), 1/sqrt(fan_in))
    fc2.bias   : default nn.Linear init                -> U(-1/sqrt(fan_in), 1/sqrt(fan_in))

    Weights are returned already in (in, out) layout.
    """
    hidden = 3 * input_dim
    k1, k2, k3, k4 = jax.random.split(key, 4)

    bound_w1 = math.sqrt(2.0) * math.sqrt(3.0 / input_dim)
    w1 = jax.random.uniform(k1, (input_dim, hidden), dtype,
                            minval=-bound_w1, maxval=bound_w1)
    bound_b1 = 1.0 / math.sqrt(input_dim)
    b1 = jax.random.uniform(k2, (hidden,), dtype,
                            minval=-bound_b1, maxval=bound_b1)

    bound_w2 = 1.0 / math.sqrt(hidden)
    w2 = jax.random.uniform(k3, (hidden, num_classes), dtype,
                            minval=-bound_w2, maxval=bound_w2)
    b2 = jax.random.uniform(k4, (num_classes,), dtype,
                            minval=-bound_w2, maxval=bound_w2)

    return w1, b1, w2, b2


def prepare_params(w1, b1, w2, b2, compute_dtype=jnp.float32):
    """One-time parameter prep (hoisted out of the per-call hot path).

    Casts weights to the MXU compute dtype (bf16 recommended on v6e/v7x,
    f32 elsewhere) and reshapes biases to (1, n).  Biases stay f32 so the
    bias-add / ReLU run on the f32 VPU path (v5e has no bf16 VPU).
    """
    return (jnp.asarray(w1, compute_dtype),
            jnp.asarray(b1, jnp.float32).reshape(1, -1),
            jnp.asarray(w2, compute_dtype),
            jnp.asarray(b2, jnp.float32).reshape(1, -1))


if __name__ == "__main__":
    key = jax.random.PRNGKey(0)
    kx, kp = jax.random.split(key)

    batch = 8
    input_dim = 32          # hidden = 3 * input_dim = 96
    num_classes = 10

    x = jax.random.normal(kx, (batch, input_dim), jnp.float32)
    w1, b1, w2, b2 = init_params(kp, input_dim, num_classes)

    # ---- f32 path: exact semantics of the PyTorch module ----
    params_f32 = prepare_params(w1, b1, w2, b2, compute_dtype=jnp.float32)
    out = simple_linear_forward(x, *params_f32)
    jax.block_until_ready(out)

    ref = jnp.maximum(x @ w1 + b1, 0.0) @ w2 + b2
    assert out.shape == (batch, num_classes)
    assert jnp.allclose(out, ref, atol=1e-5, rtol=1e-5)

    # Batch that is not a multiple of the sublane size; grid has 2 steps so
    # both v7x TensorCores would be used.
    x2 = jax.random.normal(kx, (37, input_dim), jnp.float32)
    out2 = simple_linear_forward(x2, *params_f32)
    jax.block_until_ready(out2)
    ref2 = jnp.maximum(x2 @ w1 + b1, 0.0) @ w2 + b2
    assert out2.shape == (37, num_classes)
    assert jnp.allclose(out2, ref2, atol=1e-5, rtol=1e-5)

    # ---- bf16-operand / f32-accumulate path (v6e / v7x MXU-native) ----
    params_bf16 = prepare_params(w1, b1, w2, b2, compute_dtype=jnp.bfloat16)
    out3 = simple_linear_forward(x2, *params_bf16)
    jax.block_until_ready(out3)
    assert out3.shape == (37, num_classes)
    assert jnp.allclose(out3.astype(jnp.float32), ref2, atol=5e-2, rtol=5e-2)

    print("KERNEL_OK")
</pallas_src>

<mosaic_0001>
module attributes {stable_mosaic.version = 11 : i64} {
  func.func @_mlp_kernel(%arg0: i32, %arg1: memref<8x32xf32, #tpu.memory_space<vmem>>, %arg2: memref<32x96xf32, #tpu.memory_space<vmem>>, %arg3: memref<1x96xf32, #tpu.memory_space<vmem>>, %arg4: memref<96x10xf32, #tpu.memory_space<vmem>>, %arg5: memref<1x10xf32, #tpu.memory_space<vmem>>, %arg6: memref<8x10xf32, #tpu.memory_space<vmem>>) attributes {dimension_semantics = [#tpu.dimension_semantics<parallel>], iteration_bounds = array<i64: 1>, scalar_prefetch = 0 : i64, scratch_operands = 0 : i64, tpu.core_type = #tpu.core_type<tc>, window_params = [{transform_indices = @transform_0, window_bounds = array<i64: 8, 32>}, {pipeline_mode = #tpu.pipeline_mode<synchronous>, transform_indices = @transform_1, window_bounds = array<i64: 32, 96>}, {pipeline_mode = #tpu.pipeline_mode<synchronous>, transform_indices = @transform_2, window_bounds = array<i64: 1, 96>}, {pipeline_mode = #tpu.pipeline_mode<synchronous>, transform_indices = @transform_3, window_bounds = array<i64: 96, 10>}, {pipeline_mode = #tpu.pipeline_mode<synchronous>, transform_indices = @transform_4, window_bounds = array<i64: 1, 10>}, {transform_indices = @transform_5, window_bounds = array<i64: 8, 10>}]} {
    %c0 = arith.constant 0 : index
    %c0_0 = arith.constant 0 : index
    %0 = vector.load %arg1[%c0, %c0_0] : memref<8x32xf32, #tpu.memory_space<vmem>>, vector<8x32xf32>
    %c0_1 = arith.constant 0 : index
    %c0_2 = arith.constant 0 : index
    %1 = vector.load %arg2[%c0_1, %c0_2] : memref<32x96xf32, #tpu.memory_space<vmem>>, vector<32x96xf32>
    %cst = arith.constant dense<0.000000e+00> : vector<8x96xf32>
    %2 = tpu.matmul %0, %1, %cst {dimension_numbers = #tpu.dot_dimension_numbers<[1], [0], [0], [1], [0, 0, 1, 1], [], []>} : vector<8x32xf32>, vector<32x96xf32>, vector<8x96xf32> -> vector<8x96xf32>
    %c0_3 = arith.constant 0 : index
    %c0_4 = arith.constant 0 : index
    %3 = vector.load %arg3[%c0_3, %c0_4] : memref<1x96xf32, #tpu.memory_space<vmem>>, vector<1x96xf32>
    %4 = vector.broadcast %3 : vector<1x96xf32> to vector<8x96xf32>
    %5 = arith.addf %2, %4 : vector<8x96xf32>
    %cst_5 = arith.constant 0.000000e+00 : f32
    %6 = vector.broadcast %cst_5 : f32 to vector<8x96xf32>
    %7 = arith.maximumf %5, %6 : vector<8x96xf32>
    %c0_6 = arith.constant 0 : index
    %c0_7 = arith.constant 0 : index
    %8 = vector.load %arg4[%c0_6, %c0_7] : memref<96x10xf32, #tpu.memory_space<vmem>>, vector<96x10xf32>
    %cst_8 = arith.constant dense<0.000000e+00> : vector<8x10xf32>
    %9 = tpu.matmul %7, %8, %cst_8 {dimension_numbers = #tpu.dot_dimension_numbers<[1], [0], [0], [1], [0, 0, 1, 1], [], []>} : vector<8x96xf32>, vector<96x10xf32>, vector<8x10xf32> -> vector<8x10xf32>
    %c0_9 = arith.constant 0 : index
    %c0_10 = arith.constant 0 : index
    %10 = vector.load %arg5[%c0_9, %c0_10] : memref<1x10xf32, #tpu.memory_space<vmem>>, vector<1x10xf32>
    %11 = vector.broadcast %10 : vector<1x10xf32> to vector<8x10xf32>
    %12 = arith.addf %9, %11 : vector<8x10xf32>
    %c0_11 = arith.constant 0 : index
    %c0_12 = arith.constant 0 : index
    %13 = vector.load %arg6[%c0_11, %c0_12] : memref<8x10xf32, #tpu.memory_space<vmem>>, vector<8x10xf32>
    tpu.vector_store %arg6[%c0_11, %c0_12], %12 {strides = array<i32>} : memref<8x10xf32, #tpu.memory_space<vmem>>, vector<8x10xf32>,
    return
  }
  func.func @transform_0(%arg0: i32) -> (i32, i32) {
    %c0_i32 = arith.constant 0 : i32
    %c0_i32_0 = arith.constant 0 : i32
    return %arg0, %c0_i32 : i32, i32
  }
  func.func @transform_1(%arg0: i32) -> (i32, i32) {
    %c0_i32 = arith.constant 0 : i32
    %c0_i32_0 = arith.constant 0 : i32
    %c0_i32_1 = arith.constant 0 : i32
    return %c0_i32, %c0_i32_0 : i32, i32
  }
  func.func @transform_2(%arg0: i32) -> (i32, i32) {
    %c0_i32 = arith.constant 0 : i32
    %c0_i32_0 = arith.constant 0 : i32
    %c0_i32_1 = arith.constant 0 : i32
    return %c0_i32, %c0_i32_0 : i32, i32
  }
  func.func @transform_3(%arg0: i32) -> (i32, i32) {
    %c0_i32 = arith.constant 0 : i32
    %c0_i32_0 = arith.constant 0 : i32
    %c0_i32_1 = arith.constant 0 : i32
    return %c0_i32, %c0_i32_0 : i32, i32
  }
  func.func @transform_4(%arg0: i32) -> (i32, i32) {
    %c0_i32 = arith.constant 0 : i32
    %c0_i32_0 = arith.constant 0 : i32
    %c0_i32_1 = arith.constant 0 : i32
    return %c0_i32, %c0_i32_0 : i32, i32
  }
  func.func @transform_5(%arg0: i32) -> (i32, i32) {
    %c0_i32 = arith.constant 0 : i32
    %c0_i32_0 = arith.constant 0 : i32
    return %arg0, %c0_i32 : i32, i32
  }
}

</mosaic_0001>

<llo_original>
// kernel: simple_linear_forward.1
$region0: #{simple_linear_forward.1}
  #allocation0 [shape = 'u32[]', space=smem, size = 0x4, offset = 0x4, fixed_abs, tag = 'smem constant byte address 0x4 - core index']
  #allocation1 [shape = 'u32[144,128]{1,0:T(1,128)}', space=vmem, size = 0x12000, scoped, tag = 'internal scratch']
  %s0 = inlined_call_operand.vmem [shape: f32[8,32], index: 0, kind: input, shape index: {}]
  %s1 = inlined_call_operand.vmem [shape: f32[32,96], index: 1, kind: input, shape index: {}]
  %s2 = inlined_call_operand.vmem [shape: f32[1,96], index: 2, kind: input, shape index: {}]
  %s3 = inlined_call_operand.vmem [shape: f32[96,10], index: 3, kind: input, shape index: {}]
  %s4 = inlined_call_operand.vmem [shape: f32[1,10], index: 4, kind: input, shape index: {}]
  %s5 = inlined_call_operand.hbm [shape: f32[8,10], index: 5, kind: output, shape index: {}]
  %s6 = sld [smem:[#allocation0]]
  $region30: #{simple_linear_forward.1} parent=0
    _
  %s8 = ssub.s32 1, %s6
  %s9 = scalar_select 0, %s8, %s6
  $region1: #{simple_linear_forward.1} parent=0
    #allocation2 [shape = 'u8[4096]{0}', space=vmem, size = 0x1000, scoped, tag = 'output window, operand 0, single buffered']
    #allocation3 [shape = 's32[1]{0}', space=sflag, size = 0x4, scoped, tag = 'scoped memory for simple_linear_forward.1']
    %10 = vsyncpa [#allocation3], 0
    // Predicated region
    $region2: #{simple_linear_forward.1} parent=1 // pred_check
      _
    $region3: #{simple_linear_forward.1} parent=1 // pred_check_branch
      %12 = sbr.rel (0) target = $region5
    $region4: #{simple_linear_forward.1} parent=1 // pred_region
      _
    $region5: #{simple_linear_forward.1} parent=1 // pred_fallthru
      _
    // Predicated region
    $region6: #{simple_linear_forward.1} parent=1 // pred_check
      _
    $region7: #{simple_linear_forward.1} parent=1 // pred_check_branch
      %14 = sbr.rel (0) target = $region9
    $region8: #{simple_linear_forward.1} parent=1 // pred_region
      _
    $region9: #{simple_linear_forward.1} parent=1 // pred_fallthru
      _
    // Predicated region
    $region10: #{simple_linear_forward.1} parent=1 // pred_check
      _
    $region11: #{simple_linear_forward.1} parent=1 // pred_check_branch
      %16 = sbr.rel (0) target = $region13
    $region12: #{simple_linear_forward.1} parent=1 // pred_region
      _
    $region13: #{simple_linear_forward.1} parent=1 // pred_fallthru
      _
    // Predicated region
    $region14: #{simple_linear_forward.1} parent=1 // pred_check
      _
    $region15: #{simple_linear_forward.1} parent=1 // pred_check_branch
      %18 = sbr.rel (0) target = $region17
    $region16: #{simple_linear_forward.1} parent=1 // pred_region
      _
    $region17: #{simple_linear_forward.1} parent=1 // pred_fallthru
      _
    // Predicated region
    $region18: #{simple_linear_forward.1} parent=1 // pred_check
      _
    $region19: #{simple_linear_forward.1} parent=1 // pred_check_branch
      %20 = sbr.rel (0) target = $region21
    $region20: #{simple_linear_forward.1} parent=1 // pred_region
      _
    $region21: #{simple_linear_forward.1} parent=1 // pred_fallthru
      _
    %v21 = vld [vmem:[%s0] sm:$0xff]
    %v22 = vld [vmem:[%s1] sm:$0xff]
    %v23 = vld [vmem:[%s1 + $0x8] sm:$0xff]
    %v24 = vld [vmem:[%s1 + $0x10] sm:$0xff]
    %v25 = vld [vmem:[%s1 + $0x18] sm:$0xff]
    %v26 = vld [vmem:[%s2] sm:$0x1]
    %v28 = vlaneseq
    %v29 = vshrl.u32 %v28, 7
    %v30 = vsub.s32 0, %v29
    %v31 = vrot.slane %v26, %v30
    %vm33 = vcmask 261120
    %v35 = vsel %vm33, %v21, 0
    %37 = vmatprep.subr.mxu0 0.0
    %38 = vmatpush1.msra.mxu0 0.0
    %39 = vmatprep.subr.mxu0 0.0
    %40 = vmatpush1.msra.mxu0 0.0
    %41 = vmatprep.subr.mxu0 0.0
    %42 = vmatpush1.msra.mxu0 0.0
    %43 = vmatprep.subr.mxu0 0.0
    %44 = vmatpush1.msra.mxu0 0.0
    %45 = vmatprep.subr.mxu0 0.0
    %46 = vmatpush1.msra.mxu0 0.0
    %47 = vmatprep.subr.mxu0 0.0
    %48 = vmatpush1.msra.mxu0 0.0
    %49 = vmatprep.subr.mxu0 0.0
    %50 = vmatpush1.msra.mxu0 0.0
    %51 = vmatprep.subr.mxu0 0.0
    %52 = vmatpush1.msra.mxu0 0.0
    %53 = vmatprep.subr.mxu0 0.0
    %54 = vmatpush1.msra.mxu0 0.0
    %55 = vmatprep.subr.mxu0 0.0
    %56 = vmatpush1.msra.mxu0 0.0
    %57 = vmatprep.subr.mxu0 0.0
    %58 = vmatpush1.msra.mxu0 0.0
    %59 = vmatprep.subr.mxu0 0.0
    %60 = vmatpush1.msra.mxu0 0.0
    %61 = vmatprep.subr.mxu0 0.0
    %62 = vmatpush1.msra.mxu0 %v25
    %63 = vmatprep.subr.mxu0 0.0
    %64 = vmatpush1.msra.mxu0 %v24
    %65 = vmatprep.subr.mxu0 0.0
    %66 = vmatpush1.msra.mxu0 %v23
    %67 = vmatprep.subr.mxu0 0.0
    %68 = vmatpush1.msra.mxu0 %v22
    %69 = vmatprep.subr.mxu0 0.0
    %70 = vmatpush2.msra.mxu0 0.0
    %71 = vmatprep.subr.mxu0 0.0
    %72 = vmatpush2.msra.mxu0 0.0
    %73 = vmatprep.subr.mxu0 0.0
    %74 = vmatpush2.msra.mxu0 0.0
    %75 = vmatprep.subr.mxu0 0.0
    %76 = vmatpush2.msra.mxu0 0.0
    %77 = vmatprep.subr.mxu0 0.0
    %78 = vmatpush2.msra.mxu0 0.0
    %79 = vmatprep.subr.mxu0 0.0
    %80 = vmatpush2.msra.mxu0 0.0
    %81 = vmatprep.subr.mxu0 0.0
    %82 = vmatpush2.msra.mxu0 0.0
    %83 = vmatprep.subr.mxu0 0.0
    %84 = vmatpush2.msra.mxu0 0.0
    %85 = vmatprep.subr.mxu0 0.0
    %86 = vmatpush2.msra.mxu0 0.0
    %87 = vmatprep.subr.mxu0 0.0
    %88 = vmatpush2.msra.mxu0 0.0
    %89 = vmatprep.subr.mxu0 0.0
    %90 = vmatpush2.msra.mxu0 0.0
    %91 = vmatprep.subr.mxu0 0.0
    %92 = vmatpush2.msra.mxu0 0.0
    %93 = vmatprep.subr.mxu0 0.0
    %94 = vmatpush2.msra.mxu0 0.0
    %95 = vmatprep.subr.mxu0 0.0
    %96 = vmatpush2.msra.mxu0 0.0
    %97 = vmatprep.subr.mxu0 0.0
    %98 = vmatpush2.msra.mxu0 0.0
    %99 = vmatprep.subr.mxu0 0.0
    %100 = vmatpush2.msra.mxu0 0.0
    %101 = vmatprep.mubr.f32.mxu0 0.0
    %102 = vmatmul.mubr.f32.gmra.mxu0 %v35
    %v103 = vpop.f32.mrf.mxu0
    %v104 = vadd.f32 %v31, %v103
    %v105 = vpop.f32.mrf.mxu0
    %106 = vdwg.mxu0
    %v107 = vmax.f32 %v104, 0.0
    %v108 = vld [vmem:[%s3] sm:$0xff]
    %v109 = vld [vmem:[%s3 + $0x8] sm:$0xff]
    %v110 = vld [vmem:[%s3 + $0x10] sm:$0xff]
    %v111 = vld [vmem:[%s3 + $0x18] sm:$0xff]
    %v112 = vld [vmem:[%s3 + $0x20] sm:$0xff]
    %v113 = vld [vmem:[%s3 + $0x28] sm:$0xff]
    %v114 = vld [vmem:[%s3 + $0x30] sm:$0xff]
    %v115 = vld [vmem:[%s3 + $0x38] sm:$0xff]
    %v116 = vld [vmem:[%s3 + $0x40] sm:$0xff]
    %v117 = vld [vmem:[%s3 + $0x48] sm:$0xff]
    %v118 = vld [vmem:[%s3 + $0x50] sm:$0xff]
    %v119 = vld [vmem:[%s3 + $0x58] sm:$0xff]
    %v120 = vld [vmem:[%s4] sm:$0x1]
    %v122 = vlaneseq
    %v123 = vshrl.u32 %v122, 7
    %v124 = vsub.s32 0, %v123
    %v125 = vrot.slane %v120, %v124
    %vm127 = vcmask 785408
    %v129 = vsel %vm127, %v107, 0
    %131 = vmatprep.subr.mxu0 0.0
    %132 = vmatpush1.msra.mxu0 0.0
    %133 = vmatprep.subr.mxu0 0.0
    %134 = vmatpush1.msra.mxu0 0.0
    %135 = vmatprep.subr.mxu0 0.0
    %136 = vmatpush1.msra.mxu0 0.0
    %137 = vmatprep.subr.mxu0 0.0
    %138 = vmatpush1.msra.mxu0 0.0
    %139 = vmatprep.subr.mxu0 0.0
    %140 = vmatpush1.msra.mxu0 %v119
    %141 = vmatprep.subr.mxu0 0.0
    %142 = vmatpush1.msra.mxu0 %v118
    %143 = vmatprep.subr.mxu0 0.0
    %144 = vmatpush1.msra.mxu0 %v117
    %145 = vmatprep.subr.mxu0 0.0
    %146 = vmatpush1.msra.mxu0 %v116
    %147 = vmatprep.subr.mxu0 0.0
    %148 = vmatpush1.msra.mxu0 %v115
    %149 = vmatprep.subr.mxu0 0.0
    %150 = vmatpush1.msra.mxu0 %v114
    %151 = vmatprep.subr.mxu0 0.0
    %152 = vmatpush1.msra.mxu0 %v113
    %153 = vmatprep.subr.mxu0 0.0
    %154 = vmatpush1.msra.mxu0 %v112
    %155 = vmatprep.subr.mxu0 0.0
    %156 = vmatpush1.msra.mxu0 %v111
    %157 = vmatprep.subr.mxu0 0.0
    %158 = vmatpush1.msra.mxu0 %v110
    %159 = vmatprep.subr.mxu0 0.0
    %160 = vmatpush1.msra.mxu0 %v109
    %161 = vmatprep.subr.mxu0 0.0
    %162 = vmatpush1.msra.mxu0 %v108
    %163 = vmatprep.subr.mxu0 0.0
    %164 = vmatpush2.msra.mxu0 0.0
    %165 = vmatprep.subr.mxu0 0.0
    %166 = vmatpush2.msra.mxu0 0.0
    %167 = vmatprep.subr.mxu0 0.0
    %168 = vmatpush2.msra.mxu0 0.0
    %169 = vmatprep.subr.mxu0 0.0
    %170 = vmatpush2.msra.mxu0 0.0
    %171 = vmatprep.subr.mxu0 0.0
    %172 = vmatpush2.msra.mxu0 0.0
    %173 = vmatprep.subr.mxu0 0.0
    %174 = vmatpush2.msra.mxu0 0.0
    %175 = vmatprep.subr.mxu0 0.0
    %176 = vmatpush2.msra.mxu0 0.0
    %177 = vmatprep.subr.mxu0 0.0
    %178 = vmatpush2.msra.mxu0 0.0
    %179 = vmatprep.subr.mxu0 0.0
    %180 = vmatpush2.msra.mxu0 0.0
    %181 = vmatprep.subr.mxu0 0.0
    %182 = vmatpush2.msra.mxu0 0.0
    %183 = vmatprep.subr.mxu0 0.0
    %184 = vmatpush2.msra.mxu0 0.0
    %185 = vmatprep.subr.mxu0 0.0
    %186 = vmatpush2.msra.mxu0 0.0
    %187 = vmatprep.subr.mxu0 0.0
    %188 = vmatpush2.msra.mxu0 0.0
    %189 = vmatprep.subr.mxu0 0.0
    %190 = vmatpush2.msra.mxu0 0.0
    %191 = vmatprep.subr.mxu0 0.0
    %192 = vmatpush2.msra.mxu0 0.0
    %193 = vmatprep.subr.mxu0 0.0
    %194 = vmatpush2.msra.mxu0 0.0
    %195 = vmatprep.mubr.f32.mxu0 0.0
    %196 = vmatmul.mubr.f32.gmra.mxu0 %v129
    %v197 = vpop.f32.mrf.mxu0
    %v198 = vadd.f32 %v125, %v197
    %v199 = vpop.f32.mrf.mxu0
    %200 = vdwg.mxu0
    %vm201 = vcmask 80896
    %202 = vst.msk [vmem:[#allocation2] sm:$0xff] %vm201, %v198
    // Predicated region
    $region22: #{simple_linear_forward.1} parent=1 // pred_check
      _
    $region23: #{simple_linear_forward.1} parent=1 // pred_check_branch
      %204 = sbr.rel (0) target = $region25
    $region24: #{simple_linear_forward.1} parent=1 // pred_region
      %s206 = ssub.s32 128, 128
      %207 = vsyncadd [#allocation3], %s206
      %s209 = sshll.u32 [#allocation2], 4
      %s210 = int_to_ptr.vmem [resolvable:$true] %s209
      %212 = dma.vmem_to_hbm [thread:$0]  %s210, 128, %s5, [#allocation3]
    $region25: #{simple_linear_forward.1} parent=1 // pred_fallthru
      _
    // Predicated region
    $region26: #{simple_linear_forward.1} parent=1 // pred_check
      _
    $region27: #{simple_linear_forward.1} parent=1 // pred_check_branch
      %214 = sbr.rel (0) target = $region29
    $region28: #{simple_linear_forward.1} parent=1 // pred_region
      %215 = dma.done [#allocation3], 128
    $region29: #{simple_linear_forward.1} parent=1 // pred_fallthru
      _
    %216 = vsyncpa [#allocation3], 1

</llo_original>
